<compile_context>
chip_gen: v6e
topology: v6e:2x2x1
jax: 0.10.0
libtpu: 0.0.40
codegen_flags: <defaults>
</compile_context>

<pallas_src>
import functools

import jax
import jax.numpy as jnp
from jax.experimental import pallas as pl
from jax.experimental.pallas import tpu as pltpu


# ---------------------------------------------------------------------------
# Pallas kernel: per (batch, spatial-tile), 16 broadcast FMAs on the VPU with
# weights / bias read as scalars from SMEM.  Fully lane- and sublane-dense.
# ---------------------------------------------------------------------------
def _blend_kernel(w_ref,      # SMEM (C, C)  blended channel-mix weight, [out_ch, in_ch]
                  bias_ref,   # SMEM (B, C)  blended conv-bias + time-embedding bias
                  x_ref,      # VMEM (1, C, TR, 128) input tile (spatial on sublane+lane)
                  out_ref):   # VMEM (1, C, TR, 128)
    b = pl.program_id(0)
    C = x_ref.shape[1]
    # Unrolled:  out[d] = bias[b, d] + sum_c W[d, c] * x[c]
    for d in range(C):
        acc = x_ref[0, 0, :, :].astype(jnp.float32) * w_ref[d, 0]
        for c in range(1, C):
            acc = acc + x_ref[0, c, :, :].astype(jnp.float32) * w_ref[d, c]
        out_ref[0, d, :, :] = (acc + bias_ref[b, d]).astype(out_ref.dtype)


# ---------------------------------------------------------------------------
# Wrapper glue
# ---------------------------------------------------------------------------
def _timestep_embedding(timesteps, dim):
    """Standard sinusoidal timestep embedding (plain JAX glue)."""
    half = dim // 2
    freqs = jnp.exp(-jnp.log(10000.0) * jnp.arange(half, dtype=jnp.float32) / half)
    args = timesteps.astype(jnp.float32)[:, None] * freqs[None, :]
    return jnp.concatenate([jnp.cos(args), jnp.sin(args)], axis=-1)  # (B, dim)


def _pick_sublane_tile(R, C, itemsize, min_tiles=1):
    """Largest TR that is a multiple of 8, divides R, fits a ~2 MiB buffer
    budget, and (when possible) leaves >= min_tiles spatial grid steps."""
    budget_bytes = 2 * 1024 * 1024                       # per (1, C, TR, 128) buffer
    max_tr = max(8, budget_bytes // (C * 128 * itemsize))
    candidates = [tr for tr in range(8, R + 1, 8)
                  if R % tr == 0 and tr <= max_tr]
    if not candidates:
        return R                                          # tiny R: full extent (legal)
    preferred = [tr for tr in candidates if R // tr >= min_tiles]
    return max(preferred) if preferred else max(candidates)


@functools.partial(jax.jit, static_argnames=("io_dtype",))
def model_blender_forward(x_nchw, timesteps, weights, Wm, bm, Tm, label_emb,
                          y=None, io_dtype=jnp.float32):
    """out = sum_i weights[i] * model_i(x, timesteps, y), collapsed algebraically."""
    B, C, H, W = x_nchw.shape
    M, F, _ = Tm.shape
    S = H * W

    # ---- pre-blend the tiny per-model parameters (plain JAX, trivial) -----
    w = weights.astype(jnp.float32)
    Wt_blend = jnp.einsum("m,mcd->dc", w, Wm.astype(jnp.float32))        # (C, C) [out, in]
    b_blend = jnp.einsum("m,mc->c", w, bm.reshape(M, C).astype(jnp.float32))
    T_blend = jnp.einsum("m,mfc->fc", w, Tm.astype(jnp.float32))         # (F, C)

    tfeat = _timestep_embedding(timesteps, F)                            # (B, F)
    if y is not None:
        tfeat = tfeat + label_emb[y]                                     # class conditioning
    # Tiny time-projection matmul hoisted out of the kernel, folded into bias.
    bias = jnp.dot(tfeat, T_blend) + b_blend[None, :]                    # (B, C) f32 -> SMEM

    # ---- lane/sublane-dense spatial layout: (B, C, S/128, 128) ------------
    S_pad = ((S + 127) // 128) * 128
    x = x_nchw.reshape(B, C, S)
    if S_pad != S:
        x = jnp.pad(x, ((0, 0), (0, 0), (0, S_pad - S)))
    R = S_pad // 128
    x = x.reshape(B, C, R, 128).astype(io_dtype)

    itemsize = jnp.dtype(io_dtype).itemsize
    TR = _pick_sublane_tile(R, C, itemsize, min_tiles=2 if B == 1 else 1)

    out = pl.pallas_call(
        _blend_kernel,
        out_shape=jax.ShapeDtypeStruct((B, C, R, 128), io_dtype),
        grid=(B, R // TR),
        in_specs=[
            pl.BlockSpec(memory_space=pltpu.MemorySpace.SMEM),           # (C, C) weights
            pl.BlockSpec(memory_space=pltpu.MemorySpace.SMEM),           # (B, C) bias
            pl.BlockSpec((1, C, TR, 128), lambda b, s: (b, 0, s, 0)),    # x tile
        ],
        out_specs=pl.BlockSpec((1, C, TR, 128), lambda b, s: (b, 0, s, 0)),
        compiler_params=pltpu.CompilerParams(
            dimension_semantics=("parallel", "parallel"),                # megacore-shardable
            vmem_limit_bytes=32 * 1024 * 1024),
        cost_estimate=pl.CostEstimate(
            flops=2 * B * C * C * S_pad,
            bytes_accessed=2 * B * C * S_pad * itemsize + (C * C + B * C) * 4,
            transcendentals=0),
    )(Wt_blend, bias, x)

    out = out.reshape(B, C, S_pad)[:, :, :S].reshape(B, C, H, W)
    return out


# ---------------------------------------------------------------------------
# Pure-JAX reference (original per-model weighted sum, for correctness check)
# ---------------------------------------------------------------------------
def _reference(x_nchw, timesteps, weights, Wm, bm, Tm, label_emb, y=None):
    B, C, H, W = x_nchw.shape
    M, F, _ = Tm.shape
    tfeat = _timestep_embedding(timesteps, F)
    if y is not None:
        tfeat = tfeat + label_emb[y]
    x = x_nchw.reshape(B, C, H * W).astype(jnp.float32)
    out = jnp.zeros((B, C, H * W), jnp.float32)
    for i in range(M):
        yi = jnp.einsum("cd,bcs->bds", Wm[i], x)                 # 1x1-conv channel mix
        yi = yi + bm[i].reshape(C)[None, :, None]                # conv bias
        yi = yi + jnp.dot(tfeat, Tm[i])[:, :, None]              # timestep embedding
        out = out + weights[i] * yi
    return out.reshape(B, C, H, W)


# ---------------------------------------------------------------------------
if __name__ == "__main__":
    B, C, H, W = 2, 4, 16, 16     # NCHW, as in the PyTorch module
    M = 3                         # number of blended models
    F = 16                        # timestep-embedding feature dim
    NUM_CLASSES = 10

    key = jax.random.PRNGKey(0)
    k_x, k_t, k_W, k_b, k_T, k_lab, k_y = jax.random.split(key, 7)

    # deterministic synthetic parameters (no checkpoint loading)
    x = jax.random.normal(k_x, (B, C, H, W), jnp.float32)
    timesteps = jax.random.randint(k_t, (B,), 0, 1000).astype(jnp.float32)
    y_labels = jax.random.randint(k_y, (B,), 0, NUM_CLASSES)

    Wm = 0.1 * jax.random.normal(k_W, (M, C, C), jnp.float32)   # per-model 1x1-conv W
    bm = 0.1 * jax.random.normal(k_b, (M, 1, C), jnp.float32)   # per-model conv bias
    Tm = 0.1 * jax.random.normal(k_T, (M, F, C), jnp.float32)   # per-model time proj
    label_emb = 0.1 * jax.random.normal(k_lab, (NUM_CLASSES, F), jnp.float32)

    blend_weights = jnp.array([0.5, 0.3, 0.2], jnp.float32)     # the ModelBlender weights

    out = model_blender_forward(x, timesteps, blend_weights,
                                Wm, bm, Tm, label_emb, y=y_labels)
    out = jax.block_until_ready(out)

    ref = _reference(x, timesteps, blend_weights, Wm, bm, Tm, label_emb, y=y_labels)
    assert out.shape == (B, C, H, W)
    assert jnp.allclose(out, ref, atol=1e-4, rtol=1e-4)

    print("KERNEL_OK")
</pallas_src>

<mosaic_0001>
module attributes {stable_mosaic.version = 11 : i64} {
  func.func @_blend_kernel(%arg0: i32, %arg1: i32, %arg2: memref<4x4xf32, #tpu.memory_space<smem>>, %arg3: memref<2x4xf32, #tpu.memory_space<smem>>, %arg4: memref<1x4x2x128xf32, #tpu.memory_space<vmem>>, %arg5: memref<1x4x2x128xf32, #tpu.memory_space<vmem>>) attributes {dimension_semantics = [#tpu.dimension_semantics<parallel>, #tpu.dimension_semantics<parallel>], iteration_bounds = array<i64: 2, 1>, scalar_prefetch = 0 : i64, scratch_operands = 0 : i64, tpu.core_type = #tpu.core_type<tc>, window_params = [{transform_indices = @transform_0, window_bounds = array<i64: 4, 4>}, {transform_indices = @transform_1, window_bounds = array<i64: 2, 4>}, {transform_indices = @transform_2, window_bounds = array<i64: 1, 4, 2, 128>}, {transform_indices = @transform_3, window_bounds = array<i64: 1, 4, 2, 128>}]} {
    %c0 = arith.constant 0 : index
    %c0_0 = arith.constant 0 : index
    %c0_1 = arith.constant 0 : index
    %c0_2 = arith.constant 0 : index
    %0 = vector.load %arg4[%c0, %c0_0, %c0_1, %c0_2] : memref<1x4x2x128xf32, #tpu.memory_space<vmem>>, vector<1x1x2x128xf32>
    %1 = vector.shape_cast %0 : vector<1x1x2x128xf32> to vector<2x128xf32>
    %c0_3 = arith.constant 0 : index
    %c0_4 = arith.constant 0 : index
    %2 = memref.load %arg2[%c0_3, %c0_4] : memref<4x4xf32, #tpu.memory_space<smem>>
    %3 = vector.broadcast %2 : f32 to vector<2x128xf32>
    %4 = arith.mulf %1, %3 : vector<2x128xf32>
    %c0_5 = arith.constant 0 : index
    %c1 = arith.constant 1 : index
    %c0_6 = arith.constant 0 : index
    %c0_7 = arith.constant 0 : index
    %5 = vector.load %arg4[%c0_5, %c1, %c0_6, %c0_7] : memref<1x4x2x128xf32, #tpu.memory_space<vmem>>, vector<1x1x2x128xf32>
    %6 = vector.shape_cast %5 : vector<1x1x2x128xf32> to vector<2x128xf32>
    %c0_8 = arith.constant 0 : index
    %c1_9 = arith.constant 1 : index
    %7 = memref.load %arg2[%c0_8, %c1_9] : memref<4x4xf32, #tpu.memory_space<smem>>
    %8 = vector.broadcast %7 : f32 to vector<2x128xf32>
    %9 = arith.mulf %6, %8 : vector<2x128xf32>
    %10 = arith.addf %4, %9 : vector<2x128xf32>
    %c0_10 = arith.constant 0 : index
    %c2 = arith.constant 2 : index
    %c0_11 = arith.constant 0 : index
    %c0_12 = arith.constant 0 : index
    %11 = vector.load %arg4[%c0_10, %c2, %c0_11, %c0_12] : memref<1x4x2x128xf32, #tpu.memory_space<vmem>>, vector<1x1x2x128xf32>
    %12 = vector.shape_cast %11 : vector<1x1x2x128xf32> to vector<2x128xf32>
    %c0_13 = arith.constant 0 : index
    %c2_14 = arith.constant 2 : index
    %13 = memref.load %arg2[%c0_13, %c2_14] : memref<4x4xf32, #tpu.memory_space<smem>>
    %14 = vector.broadcast %13 : f32 to vector<2x128xf32>
    %15 = arith.mulf %12, %14 : vector<2x128xf32>
    %16 = arith.addf %10, %15 : vector<2x128xf32>
    %c0_15 = arith.constant 0 : index
    %c3 = arith.constant 3 : index
    %c0_16 = arith.constant 0 : index
    %c0_17 = arith.constant 0 : index
    %17 = vector.load %arg4[%c0_15, %c3, %c0_16, %c0_17] : memref<1x4x2x128xf32, #tpu.memory_space<vmem>>, vector<1x1x2x128xf32>
    %18 = vector.shape_cast %17 : vector<1x1x2x128xf32> to vector<2x128xf32>
    %c0_18 = arith.constant 0 : index
    %c3_19 = arith.constant 3 : index
    %19 = memref.load %arg2[%c0_18, %c3_19] : memref<4x4xf32, #tpu.memory_space<smem>>
    %20 = vector.broadcast %19 : f32 to vector<2x128xf32>
    %21 = arith.mulf %18, %20 : vector<2x128xf32>
    %22 = arith.addf %16, %21 : vector<2x128xf32>
    %23 = arith.index_cast %arg0 : i32 to index
    %c0_20 = arith.constant 0 : index
    %24 = memref.load %arg3[%23, %c0_20] : memref<2x4xf32, #tpu.memory_space<smem>>
    %25 = vector.broadcast %24 : f32 to vector<2x128xf32>
    %26 = arith.addf %22, %25 : vector<2x128xf32>
    %c0_21 = arith.constant 0 : index
    %c0_22 = arith.constant 0 : index
    %c0_23 = arith.constant 0 : index
    %c0_24 = arith.constant 0 : index
    %27 = vector.load %arg5[%c0_21, %c0_22, %c0_23, %c0_24] : memref<1x4x2x128xf32, #tpu.memory_space<vmem>>, vector<1x1x2x128xf32>
    %28 = vector.shape_cast %27 : vector<1x1x2x128xf32> to vector<2x128xf32>
    %29 = vector.shape_cast %26 : vector<2x128xf32> to vector<1x1x2x128xf32>
    tpu.vector_store %arg5[%c0_21, %c0_22, %c0_23, %c0_24], %29 {strides = array<i32>} : memref<1x4x2x128xf32, #tpu.memory_space<vmem>>, vector<1x1x2x128xf32>,
    %c0_25 = arith.constant 0 : index
    %c0_26 = arith.constant 0 : index
    %c0_27 = arith.constant 0 : index
    %c0_28 = arith.constant 0 : index
    %30 = vector.load %arg4[%c0_25, %c0_26, %c0_27, %c0_28] : memref<1x4x2x128xf32, #tpu.memory_space<vmem>>, vector<1x1x2x128xf32>
    %31 = vector.shape_cast %30 : vector<1x1x2x128xf32> to vector<2x128xf32>
    %c1_29 = arith.constant 1 : index
    %c0_30 = arith.constant 0 : index
    %32 = memref.load %arg2[%c1_29, %c0_30] : memref<4x4xf32, #tpu.memory_space<smem>>
    %33 = vector.broadcast %32 : f32 to vector<2x128xf32>
    %34 = arith.mulf %31, %33 : vector<2x128xf32>
    %c0_31 = arith.constant 0 : index
    %c1_32 = arith.constant 1 : index
    %c0_33 = arith.constant 0 : index
    %c0_34 = arith.constant 0 : index
    %35 = vector.load %arg4[%c0_31, %c1_32, %c0_33, %c0_34] : memref<1x4x2x128xf32, #tpu.memory_space<vmem>>, vector<1x1x2x128xf32>
    %36 = vector.shape_cast %35 : vector<1x1x2x128xf32> to vector<2x128xf32>
    %c1_35 = arith.constant 1 : index
    %c1_36 = arith.constant 1 : index
    %37 = memref.load %arg2[%c1_35, %c1_36] : memref<4x4xf32, #tpu.memory_space<smem>>
    %38 = vector.broadcast %37 : f32 to vector<2x128xf32>
    %39 = arith.mulf %36, %38 : vector<2x128xf32>
    %40 = arith.addf %34, %39 : vector<2x128xf32>
    %c0_37 = arith.constant 0 : index
    %c2_38 = arith.constant 2 : index
    %c0_39 = arith.constant 0 : index
    %c0_40 = arith.constant 0 : index
    %41 = vector.load %arg4[%c0_37, %c2_38, %c0_39, %c0_40] : memref<1x4x2x128xf32, #tpu.memory_space<vmem>>, vector<1x1x2x128xf32>
    %42 = vector.shape_cast %41 : vector<1x1x2x128xf32> to vector<2x128xf32>
    %c1_41 = arith.constant 1 : index
    %c2_42 = arith.constant 2 : index
    %43 = memref.load %arg2[%c1_41, %c2_42] : memref<4x4xf32, #tpu.memory_space<smem>>
    %44 = vector.broadcast %43 : f32 to vector<2x128xf32>
    %45 = arith.mulf %42, %44 : vector<2x128xf32>
    %46 = arith.addf %40, %45 : vector<2x128xf32>
    %c0_43 = arith.constant 0 : index
    %c3_44 = arith.constant 3 : index
    %c0_45 = arith.constant 0 : index
    %c0_46 = arith.constant 0 : index
    %47 = vector.load %arg4[%c0_43, %c3_44, %c0_45, %c0_46] : memref<1x4x2x128xf32, #tpu.memory_space<vmem>>, vector<1x1x2x128xf32>
    %48 = vector.shape_cast %47 : vector<1x1x2x128xf32> to vector<2x128xf32>
    %c1_47 = arith.constant 1 : index
    %c3_48 = arith.constant 3 : index
    %49 = memref.load %arg2[%c1_47, %c3_48] : memref<4x4xf32, #tpu.memory_space<smem>>
    %50 = vector.broadcast %49 : f32 to vector<2x128xf32>
    %51 = arith.mulf %48, %50 : vector<2x128xf32>
    %52 = arith.addf %46, %51 : vector<2x128xf32>
    %53 = arith.index_cast %arg0 : i32 to index
    %c1_49 = arith.constant 1 : index
    %54 = memref.load %arg3[%53, %c1_49] : memref<2x4xf32, #tpu.memory_space<smem>>
    %55 = vector.broadcast %54 : f32 to vector<2x128xf32>
    %56 = arith.addf %52, %55 : vector<2x128xf32>
    %c0_50 = arith.constant 0 : index
    %c1_51 = arith.constant 1 : index
    %c0_52 = arith.constant 0 : index
    %c0_53 = arith.constant 0 : index
    %57 = vector.load %arg5[%c0_50, %c1_51, %c0_52, %c0_53] : memref<1x4x2x128xf32, #tpu.memory_space<vmem>>, vector<1x1x2x128xf32>
    %58 = vector.shape_cast %57 : vector<1x1x2x128xf32> to vector<2x128xf32>
    %59 = vector.shape_cast %56 : vector<2x128xf32> to vector<1x1x2x128xf32>
    tpu.vector_store %arg5[%c0_50, %c1_51, %c0_52, %c0_53], %59 {strides = array<i32>} : memref<1x4x2x128xf32, #tpu.memory_space<vmem>>, vector<1x1x2x128xf32>,
    %c0_54 = arith.constant 0 : index
    %c0_55 = arith.constant 0 : index
    %c0_56 = arith.constant 0 : index
    %c0_57 = arith.constant 0 : index
    %60 = vector.load %arg4[%c0_54, %c0_55, %c0_56, %c0_57] : memref<1x4x2x128xf32, #tpu.memory_space<vmem>>, vector<1x1x2x128xf32>
    %61 = vector.shape_cast %60 : vector<1x1x2x128xf32> to vector<2x128xf32>
    %c2_58 = arith.constant 2 : index
    %c0_59 = arith.constant 0 : index
    %62 = memref.load %arg2[%c2_58, %c0_59] : memref<4x4xf32, #tpu.memory_space<smem>>
    %63 = vector.broadcast %62 : f32 to vector<2x128xf32>
    %64 = arith.mulf %61, %63 : vector<2x128xf32>
    %c0_60 = arith.constant 0 : index
    %c1_61 = arith.constant 1 : index
    %c0_62 = arith.constant 0 : index
    %c0_63 = arith.constant 0 : index
    %65 = vector.load %arg4[%c0_60, %c1_61, %c0_62, %c0_63] : memref<1x4x2x128xf32, #tpu.memory_space<vmem>>, vector<1x1x2x128xf32>
    %66 = vector.shape_cast %65 : vector<1x1x2x128xf32> to vector<2x128xf32>
    %c2_64 = arith.constant 2 : index
    %c1_65 = arith.constant 1 : index
    %67 = memref.load %arg2[%c2_64, %c1_65] : memref<4x4xf32, #tpu.memory_space<smem>>
    %68 = vector.broadcast %67 : f32 to vector<2x128xf32>
    %69 = arith.mulf %66, %68 : vector<2x128xf32>
    %70 = arith.addf %64, %69 : vector<2x128xf32>
    %c0_66 = arith.constant 0 : index
    %c2_67 = arith.constant 2 : index
    %c0_68 = arith.constant 0 : index
    %c0_69 = arith.constant 0 : index
    %71 = vector.load %arg4[%c0_66, %c2_67, %c0_68, %c0_69] : memref<1x4x2x128xf32, #tpu.memory_space<vmem>>, vector<1x1x2x128xf32>
    %72 = vector.shape_cast %71 : vector<1x1x2x128xf32> to vector<2x128xf32>
    %c2_70 = arith.constant 2 : index
    %c2_71 = arith.constant 2 : index
    %73 = memref.load %arg2[%c2_70, %c2_71] : memref<4x4xf32, #tpu.memory_space<smem>>
    %74 = vector.broadcast %73 : f32 to vector<2x128xf32>
    %75 = arith.mulf %72, %74 : vector<2x128xf32>
    %76 = arith.addf %70, %75 : vector<2x128xf32>
    %c0_72 = arith.constant 0 : index
    %c3_73 = arith.constant 3 : index
    %c0_74 = arith.constant 0 : index
    %c0_75 = arith.constant 0 : index
    %77 = vector.load %arg4[%c0_72, %c3_73, %c0_74, %c0_75] : memref<1x4x2x128xf32, #tpu.memory_space<vmem>>, vector<1x1x2x128xf32>
    %78 = vector.shape_cast %77 : vector<1x1x2x128xf32> to vector<2x128xf32>
    %c2_76 = arith.constant 2 : index
    %c3_77 = arith.constant 3 : index
    %79 = memref.load %arg2[%c2_76, %c3_77] : memref<4x4xf32, #tpu.memory_space<smem>>
    %80 = vector.broadcast %79 : f32 to vector<2x128xf32>
    %81 = arith.mulf %78, %80 : vector<2x128xf32>
    %82 = arith.addf %76, %81 : vector<2x128xf32>
    %83 = arith.index_cast %arg0 : i32 to index
    %c2_78 = arith.constant 2 : index
    %84 = memref.load %arg3[%83, %c2_78] : memref<2x4xf32, #tpu.memory_space<smem>>
    %85 = vector.broadcast %84 : f32 to vector<2x128xf32>
    %86 = arith.addf %82, %85 : vector<2x128xf32>
    %c0_79 = arith.constant 0 : index
    %c2_80 = arith.constant 2 : index
    %c0_81 = arith.constant 0 : index
    %c0_82 = arith.constant 0 : index
    %87 = vector.load %arg5[%c0_79, %c2_80, %c0_81, %c0_82] : memref<1x4x2x128xf32, #tpu.memory_space<vmem>>, vector<1x1x2x128xf32>
    %88 = vector.shape_cast %87 : vector<1x1x2x128xf32> to vector<2x128xf32>
    %89 = vector.shape_cast %86 : vector<2x128xf32> to vector<1x1x2x128xf32>
    tpu.vector_store %arg5[%c0_79, %c2_80, %c0_81, %c0_82], %89 {strides = array<i32>} : memref<1x4x2x128xf32, #tpu.memory_space<vmem>>, vector<1x1x2x128xf32>,
    %c0_83 = arith.constant 0 : index
    %c0_84 = arith.constant 0 : index
    %c0_85 = arith.constant 0 : index
    %c0_86 = arith.constant 0 : index
    %90 = vector.load %arg4[%c0_83, %c0_84, %c0_85, %c0_86] : memref<1x4x2x128xf32, #tpu.memory_space<vmem>>, vector<1x1x2x128xf32>
    %91 = vector.shape_cast %90 : vector<1x1x2x128xf32> to vector<2x128xf32>
    %c3_87 = arith.constant 3 : index
    %c0_88 = arith.constant 0 : index
    %92 = memref.load %arg2[%c3_87, %c0_88] : memref<4x4xf32, #tpu.memory_space<smem>>
    %93 = vector.broadcast %92 : f32 to vector<2x128xf32>
    %94 = arith.mulf %91, %93 : vector<2x128xf32>
    %c0_89 = arith.constant 0 : index
    %c1_90 = arith.constant 1 : index
    %c0_91 = arith.constant 0 : index
    %c0_92 = arith.constant 0 : index
    %95 = vector.load %arg4[%c0_89, %c1_90, %c0_91, %c0_92] : memref<1x4x2x128xf32, #tpu.memory_space<vmem>>, vector<1x1x2x128xf32>
    %96 = vector.shape_cast %95 : vector<1x1x2x128xf32> to vector<2x128xf32>
    %c3_93 = arith.constant 3 : index
    %c1_94 = arith.constant 1 : index
    %97 = memref.load %arg2[%c3_93, %c1_94] : memref<4x4xf32, #tpu.memory_space<smem>>
    %98 = vector.broadcast %97 : f32 to vector<2x128xf32>
    %99 = arith.mulf %96, %98 : vector<2x128xf32>
    %100 = arith.addf %94, %99 : vector<2x128xf32>
    %c0_95 = arith.constant 0 : index
    %c2_96 = arith.constant 2 : index
    %c0_97 = arith.constant 0 : index
    %c0_98 = arith.constant 0 : index
    %101 = vector.load %arg4[%c0_95, %c2_96, %c0_97, %c0_98] : memref<1x4x2x128xf32, #tpu.memory_space<vmem>>, vector<1x1x2x128xf32>
    %102 = vector.shape_cast %101 : vector<1x1x2x128xf32> to vector<2x128xf32>
    %c3_99 = arith.constant 3 : index
    %c2_100 = arith.constant 2 : index
    %103 = memref.load %arg2[%c3_99, %c2_100] : memref<4x4xf32, #tpu.memory_space<smem>>
    %104 = vector.broadcast %103 : f32 to vector<2x128xf32>
    %105 = arith.mulf %102, %104 : vector<2x128xf32>
    %106 = arith.addf %100, %105 : vector<2x128xf32>
    %c0_101 = arith.constant 0 : index
    %c3_102 = arith.constant 3 : index
    %c0_103 = arith.constant 0 : index
    %c0_104 = arith.constant 0 : index
    %107 = vector.load %arg4[%c0_101, %c3_102, %c0_103, %c0_104] : memref<1x4x2x128xf32, #tpu.memory_space<vmem>>, vector<1x1x2x128xf32>
    %108 = vector.shape_cast %107 : vector<1x1x2x128xf32> to vector<2x128xf32>
    %c3_105 = arith.constant 3 : index
    %c3_106 = arith.constant 3 : index
    %109 = memref.load %arg2[%c3_105, %c3_106] : memref<4x4xf32, #tpu.memory_space<smem>>
    %110 = vector.broadcast %109 : f32 to vector<2x128xf32>
    %111 = arith.mulf %108, %110 : vector<2x128xf32>
    %112 = arith.addf %106, %111 : vector<2x128xf32>
    %113 = arith.index_cast %arg0 : i32 to index
    %c3_107 = arith.constant 3 : index
    %114 = memref.load %arg3[%113, %c3_107] : memref<2x4xf32, #tpu.memory_space<smem>>
    %115 = vector.broadcast %114 : f32 to vector<2x128xf32>
    %116 = arith.addf %112, %115 : vector<2x128xf32>
    %c0_108 = arith.constant 0 : index
    %c3_109 = arith.constant 3 : index
    %c0_110 = arith.constant 0 : index
    %c0_111 = arith.constant 0 : index
    %117 = vector.load %arg5[%c0_108, %c3_109, %c0_110, %c0_111] : memref<1x4x2x128xf32, #tpu.memory_space<vmem>>, vector<1x1x2x128xf32>
    %118 = vector.shape_cast %117 : vector<1x1x2x128xf32> to vector<2x128xf32>
    %119 = vector.shape_cast %116 : vector<2x128xf32> to vector<1x1x2x128xf32>
    tpu.vector_store %arg5[%c0_108, %c3_109, %c0_110, %c0_111], %119 {strides = array<i32>} : memref<1x4x2x128xf32, #tpu.memory_space<vmem>>, vector<1x1x2x128xf32>,
    return
  }
  func.func @transform_0(%arg0: i32, %arg1: i32) -> (i32, i32) {
    %c0_i32 = arith.constant 0 : i32
    %c0_i32_0 = arith.constant 0 : i32
    %c0_i32_1 = arith.constant 0 : i32
    return %c0_i32, %c0_i32_0 : i32, i32
  }
  func.func @transform_1(%arg0: i32, %arg1: i32) -> (i32, i32) {
    %c0_i32 = arith.constant 0 : i32
    %c0_i32_0 = arith.constant 0 : i32
    %c0_i32_1 = arith.constant 0 : i32
    return %c0_i32, %c0_i32_0 : i32, i32
  }
  func.func @transform_2(%arg0: i32, %arg1: i32) -> (i32, i32, i32, i32) {
    %c0_i32 = arith.constant 0 : i32
    %c0_i32_0 = arith.constant 0 : i32
    %c0_i32_1 = arith.constant 0 : i32
    return %arg0, %c0_i32, %arg1, %c0_i32_0 : i32, i32, i32, i32
  }
  func.func @transform_3(%arg0: i32, %arg1: i32) -> (i32, i32, i32, i32) {
    %c0_i32 = arith.constant 0 : i32
    %c0_i32_0 = arith.constant 0 : i32
    %c0_i32_1 = arith.constant 0 : i32
    return %arg0, %c0_i32, %arg1, %c0_i32_0 : i32, i32, i32, i32
  }
}

</mosaic_0001>

<llo_original>
// kernel: model_blender_forward.1
$region0: #{model_blender_forward.1}
  #allocation0 [shape = 'u32[]', space=smem, size = 0x4, offset = 0x4, fixed_abs, tag = 'smem constant byte address 0x4 - core index']
  #allocation1 [shape = 'u32[144,128]{1,0:T(1,128)}', space=vmem, size = 0x12000, scoped, tag = 'internal scratch']
  %s0 = inlined_call_operand.vmem [shape: f32[4,4], index: 0, kind: input, shape index: {}]
  %s1 = inlined_call_operand.vmem [shape: f32[2,4], index: 1, kind: input, shape index: {}]
  %s2 = inlined_call_operand.vmem [shape: f32[2,4,2,128], index: 2, kind: input, shape index: {}]
  %s3 = inlined_call_operand.vmem [shape: f32[2,4,2,128], index: 3, kind: output, shape index: {}]
  %s4 = sld [smem:[#allocation0]]
  $region53: #{model_blender_forward.1} parent=0
    _
  %s6 = ssub.s32 1, %s4
  %s7 = scalar_select 0, %s6, %s4
  $region1: #{model_blender_forward.1} parent=0
    #allocation2 [shape = 'u8[2048]{0}', space=smem, size = 0x800, scoped, tag = 'input window, operand 0, single buffered']
    #allocation3 [shape = 's32[2]{0}', space=sflag, size = 0x8, scoped, tag = 'scoped memory for model_blender_forward.1']
    #allocation4 [shape = 'u8[1024]{0}', space=smem, size = 0x400, scoped, tag = 'input window, operand 1, single buffered']
    #allocation5 [shape = 's32[1]{0}', space=sflag, size = 0x4, scoped, tag = 'scoped memory for model_blender_forward.1']
    %8 = vsyncpa [#allocation3], 0
    %9 = vsyncpa [#allocation5], 0
    loop: start=0, step=1, limit=4
    $region2: #{model_blender_forward.1} parent=1 // loop_pre_header
      _
    $region3: #{model_blender_forward.1} parent=1 // loop_header
      %s11 = sphi 0, %s15
      %p12 = scmp.ge.s32.totalorder %s11, 4
      %s18 = sphi 0, %s30
      %s19 = sphi 0, %s26
      %s20 = sphi 0, %s18
      %s21 = sphi 0, %s19
      %s22 = sphi 0, %s20
      %s23 = sphi 0, %s21
      %s31 = sphi 0, %s31
      %s33 = sphi 0, %s31
      %s34 = sphi 0, %s33
      %s48 = sphi 0, %s34
      %s52 = sphi 0, %s52
      %s54 = sphi 0, %s52
      %s55 = sphi 0, %s54
      %s69 = sphi 0, %s55
      %s77 = sphi 0, %s79
      %s80 = sphi 0, %s77
      %s81 = sphi 0, %s80
      %s97 = sphi 0, %s81
      %s105 = sphi 0, %s107
      %s108 = sphi 0, %s105
      %s109 = sphi 0, %s108
      %s125 = sphi 0, %s109
    $region4: #{model_blender_forward.1} parent=1 // loop_header_branch
      %14 = sbr.rel (%p12) target = $region8
    $region5: #{model_blender_forward.1} parent=1 // loop_body
      %s16 = ssub.s32 %s11, 1
      %s17 = ssub.s32 %s11, 2
      %s24 = sadd.s32 1, %s19
      %p25 = scmp.ge.s32.totalorder %s24, 1
      %s26 = scalar_select %p25, 0, %s24
      %s27 = sadd.s32 1, %s18
      %s28 = scalar_select %p25, %s27, %s18
      %p29 = scmp.ge.s32.totalorder %s28, 2
      %s30 = scalar_select %p29, 0, %s28
      %s32 = sadd.s32 %s31, 1
      %p35 = scmp.eq.s32.totalorder %s11, 1
      %p36 = scmp.ne.s32.totalorder %s31, %s33
      %p37 = scmp.eq.s32.totalorder %s11, 0
      %p38 = por %p36, %p37
      %p39 = scmp.ne.s32.totalorder %s31, %s33
      %p40 = scmp.eq.s32.totalorder %s16, 1
      %p41 = por %p39, %p40
      %p42 = scmp.ne.s32.totalorder %s33, %s34
      %p43 = scmp.eq.s32.totalorder %s16, 0
      %p44 = por %p42, %p43
      %p45 = scmp.ne.s32.totalorder %s33, %s34
      %p46 = scmp.eq.s32.totalorder %s17, 1
      %p47 = por %p45, %p46
      %p49 = scmp.ne.s32.totalorder %s34, %s48
      %p50 = scmp.eq.s32.totalorder %s17, 0
      %p51 = por %p49, %p50
      %s53 = sadd.s32 %s52, 1
      %p56 = scmp.eq.s32.totalorder %s11, 1
      %p57 = scmp.ne.s32.totalorder %s52, %s54
      %p58 = scmp.eq.s32.totalorder %s11, 0
      %p59 = por %p57, %p58
      %p60 = scmp.ne.s32.totalorder %s52, %s54
      %p61 = scmp.eq.s32.totalorder %s16, 1
      %p62 = por %p60, %p61
      %p63 = scmp.ne.s32.totalorder %s54, %s55
      %p64 = scmp.eq.s32.totalorder %s16, 0
      %p65 = por %p63, %p64
      %p66 = scmp.ne.s32.totalorder %s54, %s55
      %p67 = scmp.eq.s32.totalorder %s17, 1
      %p68 = por %p66, %p67
      %p70 = scmp.ne.s32.totalorder %s55, %s69
      %p71 = scmp.eq.s32.totalorder %s17, 0
      %p72 = por %p70, %p71
      %s73 = ssub.s32 %s18, %s30
      %s74 = ssub.s32 %s19, %s26
      %s75 = sor.u32 %s73, %s74
      %p76 = scmp.eq.s32.totalorder %s75, 0
      %s78 = sadd.s32 %s77, 1
      %s79 = scalar_select %p76, %s77, %s78
      %p82 = pneg %p76
      %p83 = scmp.eq.s32.totalorder %s11, 1
      %p84 = por %p82, %p83
      %p85 = scmp.ne.s32.totalorder %s77, %s80
      %p86 = scmp.eq.s32.totalorder %s11, 0
      %p87 = por %p85, %p86
      %p88 = scmp.ne.s32.totalorder %s77, %s80
      %p89 = scmp.eq.s32.totalorder %s16, 1
      %p90 = por %p88, %p89
      %p91 = scmp.ne.s32.totalorder %s80, %s81
      %p92 = scmp.eq.s32.totalorder %s16, 0
      %p93 = por %p91, %p92
      %p94 = scmp.ne.s32.totalorder %s80, %s81
      %p95 = scmp.eq.s32.totalorder %s17, 1
      %p96 = por %p94, %p95
      %p98 = scmp.ne.s32.totalorder %s81, %s97
      %p99 = scmp.eq.s32.totalorder %s17, 0
      %p100 = por %p98, %p99
      %s101 = ssub.s32 %s18, %s30
      %s102 = ssub.s32 %s19, %s26
      %s103 = sor.u32 %s101, %s102
      %p104 = scmp.eq.s32.totalorder %s103, 0
      %s106 = sadd.s32 %s105, 1
      %s107 = scalar_select %p104, %s105, %s106
      %p110 = pneg %p104
      %p111 = scmp.eq.s32.totalorder %s11, 1
      %p112 = por %p110, %p111
      %p113 = scmp.ne.s32.totalorder %s105, %s108
      %p114 = scmp.eq.s32.totalorder %s11, 0
      %p115 = por %p113, %p114
      %p116 = scmp.ne.s32.totalorder %s105, %s108
      %p117 = scmp.eq.s32.totalorder %s16, 1
      %p118 = por %p116, %p117
      %p119 = scmp.ne.s32.totalorder %s108, %s109
      %p120 = scmp.eq.s32.totalorder %s16, 0
      %p121 = por %p119, %p120
      %p122 = scmp.ne.s32.totalorder %s108, %s109
      %p123 = scmp.eq.s32.totalorder %s17, 1
      %p124 = por %p122, %p123
      %p126 = scmp.ne.s32.totalorder %s109, %s125
      %p127 = scmp.eq.s32.totalorder %s17, 0
      %p128 = por %p126, %p127
      %p129 = scmp.le.s32.totalorder 1, %s11
      %p130 = scmp.lt.s32.totalorder %s11, 3
      %p131 = pnand %p129, %p130
      %p132 = pneg %p131
      // Predicated region
      $region9: #{model_blender_forward.1} parent=5 // pred_check
        _
      $region10: #{model_blender_forward.1} parent=5 // pred_check_branch
        %134 = sbr.rel (%p131) target = $region12
      $region11: #{model_blender_forward.1} parent=5 // pred_region
        %s135 = ssub.s32 %s11, 1
        // Predicated region
        $region13: #{model_blender_forward.1} parent=11 // pred_check
          %p136 = pneg %p44
        $region14: #{model_blender_forward.1} parent=11 // pred_check_branch
          %138 = sbr.rel (%p136) target = $region16
        $region15: #{model_blender_forward.1} parent=11 // pred_region
          %s140 = ssub.s32 64, 64
          %141 = vsyncadd [#allocation3], %s140
          %s143 = sshll.u32 %s0, 4
          %s144 = int_to_ptr.vmem [resolvable:$true] %s143
          %146 = dma.vmem_to_smem %s144, 64, [#allocation2], [#allocation3]
        $region16: #{model_blender_forward.1} parent=11 // pred_fallthru
          _
        // Predicated region
        $region17: #{model_blender_forward.1} parent=11 // pred_check
          %p147 = pneg %p65
        $region18: #{model_blender_forward.1} parent=11 // pred_check_branch
          %149 = sbr.rel (%p147) target = $region20
        $region19: #{model_blender_forward.1} parent=11 // pred_region
          %s151 = ssub.s32 32, 32
          %152 = vsyncadd [#allocation5], %s151
          %s154 = sshll.u32 %s1, 4
          %s155 = int_to_ptr.vmem [resolvable:$true] %s154
          %157 = dma.vmem_to_smem %s155, 32, [#allocation4], [#allocation5]
        $region20: #{model_blender_forward.1} parent=11 // pred_fallthru
          _
      $region12: #{model_blender_forward.1} parent=5 // pred_fallthru
        _
      %p158 = scmp.lt.s32.totalorder %s11, 2
      // Predicated region
      $region21: #{model_blender_forward.1} parent=5 // pred_check
        %p159 = pneg %p158
      $region22: #{model_blender_forward.1} parent=5 // pred_check_branch
        %161 = sbr.rel (%p159) target = $region24
      $region23: #{model_blender_forward.1} parent=5 // pred_region
        // Predicated region
        $region25: #{model_blender_forward.1} parent=23 // pred_check
          %p162 = pneg %p87
        $region26: #{model_blender_forward.1} parent=23 // pred_check_branch
          %164 = sbr.rel (%p162) target = $region28
        $region27: #{model_blender_forward.1} parent=23 // pred_region
          %p165 = scmp.lt.s32.totalorder %s18, 1
          %s166 = scalar_select %p165, %s18, 1
          %p167 = scmp.lt.s32.totalorder %s19, 0
          %s168 = scalar_select %p167, %s19, 0
          %s169 = smul.addr %s166, 4
          %s170 = sadd.s32 %s168, %s169
          %s171 = smul.addr %s170, 2
          %s172 = scalar_lea.vmem %s2, %s171
        $region28: #{model_blender_forward.1} parent=23 // pred_fallthru
          _
      $region24: #{model_blender_forward.1} parent=5 // pred_fallthru
        _
      %p173 = scmp.le.s32.totalorder 1, %s11
      %p174 = scmp.lt.s32.totalorder %s11, 3
      %p175 = pnand %p173, %p174
      %p176 = pneg %p175
      // Predicated region
      $region29: #{model_blender_forward.1} parent=5 // pred_check
        _
      $region30: #{model_blender_forward.1} parent=5 // pred_check_branch
        %178 = sbr.rel (%p175) target = $region32
      $region31: #{model_blender_forward.1} parent=5 // pred_region
        %s179 = ssub.s32 %s11, 1
        // Predicated region
        $region33: #{model_blender_forward.1} parent=31 // pred_check
          %p180 = pneg %p44
        $region34: #{model_blender_forward.1} parent=31 // pred_check_branch
          %182 = sbr.rel (%p180) target = $region36
        $region35: #{model_blender_forward.1} parent=31 // pred_region
          %183 = dma.done [#allocation3], 64
        $region36: #{model_blender_forward.1} parent=31 // pred_fallthru
          _
        // Predicated region
        $region37: #{model_blender_forward.1} parent=31 // pred_check
          %p184 = pneg %p65
        $region38: #{model_blender_forward.1} parent=31 // pred_check_branch
          %186 = sbr.rel (%p184) target = $region40
        $region39: #{model_blender_forward.1} parent=31 // pred_region
          %187 = dma.done [#allocation5], 32
        $region40: #{model_blender_forward.1} parent=31 // pred_fallthru
          _
        %188 = sfence
        %p189 = pneg %p44
        %p190 = pneg %p41
        %p191 = pneg %p65
        %p192 = pneg %p62
        %p193 = scmp.lt.s32.totalorder %s20, 1
        %s194 = scalar_select %p193, %s20, 1
        %p195 = scmp.lt.s32.totalorder %s21, 0
        %s196 = scalar_select %p195, %s21, 0
        %s197 = smul.addr %s194, 4
        %s198 = sadd.s32 %s196, %s197
        %s199 = smul.addr %s198, 2
        %s200 = scalar_lea.vmem %s2, %s199
        %p201 = pneg %p93
        %p202 = pneg %p90
        %p203 = pneg %p121
        %p204 = pneg %p118
        %p205 = scmp.lt.s32.totalorder %s20, 1
        %s206 = scalar_select %p205, %s20, 1
        %p207 = scmp.lt.s32.totalorder %s21, 0
        %s208 = scalar_select %p207, %s21, 0
        %s209 = smul.addr %s206, 4
        %s210 = sadd.s32 %s208, %s209
        %s211 = smul.addr %s210, 2
        %s212 = scalar_lea.vmem %s3, %s211
        %p213 = scmp.lt.s32.totalorder %s20, 1
        %s214 = scalar_select %p213, %s20, 1
        %p215 = scmp.lt.s32.totalorder %s21, 0
        %s216 = scalar_select %p215, %s21, 0
        %s217 = smul.addr %s214, 4
        %s218 = sadd.s32 %s216, %s217
        %s219 = smul.addr %s218, 2
        %s220 = scalar_lea.vmem %s2, %s219
        %p221 = scmp.lt.s32.totalorder %s20, 1
        %s222 = scalar_select %p221, %s20, 1
        %p223 = scmp.lt.s32.totalorder %s21, 0
        %s224 = scalar_select %p223, %s21, 0
        %s225 = smul.addr %s222, 4
        %s226 = sadd.s32 %s224, %s225
        %s227 = smul.addr %s226, 2
        %s228 = scalar_lea.vmem %s3, %s227
        %v229 = vld [vmem:[%s220] sm:$0x3]
        %s230 = sld [smem:[#allocation2]]
        %v231 = vstv %s230
        %v232 = vmul.f32 %v229, %v231
        %s233 = scalar_lea.vmem %s220, 2
        %v234 = vld [vmem:[%s233] sm:$0x3]
        %s235 = sld [smem:[#allocation2 + $0x1]]
        %v236 = vstv %s235
        %v237 = vmul.f32 %v234, %v236
        %v238 = vadd.f32 %v232, %v237
        %s239 = scalar_lea.vmem %s220, 4
        %v240 = vld [vmem:[%s239] sm:$0x3]
        %s241 = sld [smem:[#allocation2 + $0x2]]
        %v242 = vstv %s241
        %v243 = vmul.f32 %v240, %v242
        %v244 = vadd.f32 %v238, %v243
        %s245 = scalar_lea.vmem %s220, 6
        %v246 = vld [vmem:[%s245] sm:$0x3]
        %s247 = sld [smem:[#allocation2 + $0x3]]
        %v248 = vstv %s247
        %v249 = vmul.f32 %v246, %v248
        %v250 = vadd.f32 %v244, %v249
        %s251 = smul.u32 %s20, 128
        %s252 = sld [smem:[#allocation4 + %s251]]
        %v253 = vstv %s252
        %v254 = vadd.f32 %v250, %v253
        %255 = vst [vmem:[%s228] sm:$0x3] %v254
        %v256 = vld [vmem:[%s220] sm:$0x3]
        %s257 = sld [smem:[#allocation2 + $0x80]]
        %v258 = vstv %s257
        %v259 = vmul.f32 %v256, %v258
        %v260 = vld [vmem:[%s233] sm:$0x3]
        %s261 = sld [smem:[#allocation2 + $0x81]]
        %v262 = vstv %s261
        %v263 = vmul.f32 %v260, %v262
        %v264 = vadd.f32 %v259, %v263
        %v265 = vld [vmem:[%s239] sm:$0x3]
        %s266 = sld [smem:[#allocation2 + $0x82]]
        %v267 = vstv %s266
        %v268 = vmul.f32 %v265, %v267
        %v269 = vadd.f32 %v264, %v268
        %v270 = vld [vmem:[%s245] sm:$0x3]
        %s271 = sld [smem:[#allocation2 + $0x83]]
        %v272 = vstv %s271
        %v273 = vmul.f32 %v270, %v272
        %v274 = vadd.f32 %v269, %v273
        %s275 = sadd.s32 %s251, 1
        %s276 = sld [smem:[#allocation4 + %s275]]
        %v277 = vstv %s276
        %v278 = vadd.f32 %v274, %v277
        %s279 = scalar_lea.vmem %s228, 2
        %280 = vst [vmem:[%s279] sm:$0x3] %v278
        %v281 = vld [vmem:[%s220] sm:$0x3]
        %s282 = sld [smem:[#allocation2 + $0x100]]
        %v283 = vstv %s282
        %v284 = vmul.f32 %v281, %v283
        %v285 = vld [vmem:[%s233] sm:$0x3]
        %s286 = sld [smem:[#allocation2 + $0x101]]
        %v287 = vstv %s286
        %v288 = vmul.f32 %v285, %v287
        %v289 = vadd.f32 %v284, %v288
        %v290 = vld [vmem:[%s239] sm:$0x3]
        %s291 = sld [smem:[#allocation2 + $0x102]]
        %v292 = vstv %s291
        %v293 = vmul.f32 %v290, %v292
        %v294 = vadd.f32 %v289, %v293
        %v295 = vld [vmem:[%s245] sm:$0x3]
        %s296 = sld [smem:[#allocation2 + $0x103]]
        %v297 = vstv %s296
        %v298 = vmul.f32 %v295, %v297
        %v299 = vadd.f32 %v294, %v298
        %s300 = sadd.s32 %s251, 2
        %s301 = sld [smem:[#allocation4 + %s300]]
        %v302 = vstv %s301
        %v303 = vadd.f32 %v299, %v302
        %s304 = scalar_lea.vmem %s228, 4
        %305 = vst [vmem:[%s304] sm:$0x3] %v303
        %v306 = vld [vmem:[%s220] sm:$0x3]
        %s307 = sld [smem:[#allocation2 + $0x180]]
        %v308 = vstv %s307
        %v309 = vmul.f32 %v306, %v308
        %v310 = vld [vmem:[%s233] sm:$0x3]
        %s311 = sld [smem:[#allocation2 + $0x181]]
        %v312 = vstv %s311
        %v313 = vmul.f32 %v310, %v312
        %v314 = vadd.f32 %v309, %v313
        %v315 = vld [vmem:[%s239] sm:$0x3]
        %s316 = sld [smem:[#allocation2 + $0x182]]
        %v317 = vstv %s316
        %v318 = vmul.f32 %v315, %v317
        %v319 = vadd.f32 %v314, %v318
        %v320 = vld [vmem:[%s245] sm:$0x3]
        %s321 = sld [smem:[#allocation2 + $0x183]]
        %v322 = vstv %s321
        %v323 = vmul.f32 %v320, %v322
        %v324 = vadd.f32 %v319, %v323
        %s325 = sadd.s32 %s251, 3
        %s326 = sld [smem:[#allocation4 + %s325]]
        %v327 = vstv %s326
        %v328 = vadd.f32 %v324, %v327
        %s329 = scalar_lea.vmem %s228, 6
        %330 = vst [vmem:[%s329] sm:$0x3] %v328
        %p331 = scmp.lt.s32.totalorder %s20, 1
        %s332 = scalar_select %p331, %s20, 1
        %p333 = scmp.lt.s32.totalorder %s21, 0
        %s334 = scalar_select %p333, %s21, 0
        %s335 = smul.addr %s332, 4
        %s336 = sadd.s32 %s334, %s335
        %s337 = smul.addr %s336, 2
        %s338 = scalar_lea.vmem %s3, %s337
        // Predicated region
        $region41: #{model_blender_forward.1} parent=31 // pred_check
          %p339 = pneg %p118
        $region42: #{model_blender_forward.1} parent=31 // pred_check_branch
          %341 = sbr.rel (%p339) target = $region44
        $region43: #{model_blender_forward.1} parent=31 // pred_region
          _
        $region44: #{model_blender_forward.1} parent=31 // pred_fallthru
          _
      $region32: #{model_blender_forward.1} parent=5 // pred_fallthru
        _
      %p342 = scmp.le.s32.totalorder 2, %s11
      // Predicated region
      $region45: #{model_blender_forward.1} parent=5 // pred_check
        %p343 = pneg %p342
      $region46: #{model_blender_forward.1} parent=5 // pred_check_branch
        %345 = sbr.rel (%p343) target = $region48
      $region47: #{model_blender_forward.1} parent=5 // pred_region
        %s346 = ssub.s32 %s11, 2
        // Predicated region
        $region49: #{model_blender_forward.1} parent=47 // pred_check
          %p347 = pneg %p124
        $region50: #{model_blender_forward.1} parent=47 // pred_check_branch
          %349 = sbr.rel (%p347) target = $region52
        $region51: #{model_blender_forward.1} parent=47 // pred_region
          %p350 = scmp.lt.s32.totalorder %s22, 1
          %s351 = scalar_select %p350, %s22, 1
          %p352 = scmp.lt.s32.totalorder %s23, 0
          %s353 = scalar_select %p352, %s23, 0
          %s354 = smul.addr %s351, 4
          %s355 = sadd.s32 %s353, %s354
          %s356 = smul.addr %s355, 2
          %s357 = scalar_lea.vmem %s3, %s356
        $region52: #{model_blender_forward.1} parent=47 // pred_fallthru
          _
      $region48: #{model_blender_forward.1} parent=5 // pred_fallthru
        _
    $region6: #{model_blender_forward.1} parent=1 // loop_footer
      %s15 = sadd.s32 1, %s11
    $region7: #{model_blender_forward.1} parent=1 // loop_footer_branch
      %10 = sbr.rel target = $region3
    $region8: #{model_blender_forward.1} parent=1 // loop_exit
      _
    %358 = vsyncpa [#allocation3], 1
    %s359 = scalar_lea.sflag [#allocation3], 1
    %360 = vsyncpa %s359, 1
    %361 = vsyncpa [#allocation5], 1

</llo_original>
